<compile_context>
chip_gen: v5e
topology: v5e:2x2
jax: 0.10.0
libtpu: 0.0.40
codegen_flags: <defaults>
</compile_context>

<pallas_src>
import math
import jax
import jax.numpy as jnp
from jax.experimental import pallas as pl
from jax.experimental.pallas import tpu as pltpu


# ---------------------------------------------------------------------------
# Kernel 1 (parallel): gate pre-activations  X_proj = x @ W_ih^T + (b_ih+b_hh)
# ---------------------------------------------------------------------------
def _proj_kernel(x_ref, wih_ref, b_ref, out_ref):
    out_ref[...] = (
        jnp.dot(x_ref[...], wih_ref[...], preferred_element_type=jnp.float32)
        + b_ref[...]
    ).astype(out_ref.dtype)


def _input_projection(x_sbD, wih_t, bias, *, matmul_dtype):
    S, B, D = x_sbD.shape
    H4 = wih_t.shape[1]
    rows = S * B
    x2d = x_sbD.reshape(rows, D).astype(matmul_dtype)
    wih = wih_t.astype(matmul_dtype)
    # Small shapes -> a single full-array block. For very large S*B, tile the
    # row axis (multiple of 8) and keep the axis marked "parallel" so the
    # projection shards across both TensorCores on v7x.
    proj = pl.pallas_call(
        _proj_kernel,
        out_shape=jax.ShapeDtypeStruct((rows, H4), jnp.float32),
        grid_spec=pltpu.PrefetchScalarGridSpec(
            num_scalar_prefetch=0,
            grid=(1,),
            in_specs=[
                pl.BlockSpec((rows, D), lambda i: (0, 0)),
                pl.BlockSpec((D, H4), lambda i: (0, 0)),
                pl.BlockSpec((1, H4), lambda i: (0, 0)),
            ],
            out_specs=pl.BlockSpec((rows, H4), lambda i: (0, 0)),
        ),
        compiler_params=pltpu.CompilerParams(
            dimension_semantics=("parallel",),
        ),
    )(x2d, wih, bias)
    return proj.reshape(S, B, H4)


# ---------------------------------------------------------------------------
# Kernel 2 (serial recurrence): chunk of T timesteps per grid step
# ---------------------------------------------------------------------------
def _gate_step(xp_t, h, c, whh, H):
    # gates already contain x_t @ W_ih^T + bias; add the recurrent term only.
    gates = xp_t + jnp.dot(h.astype(whh.dtype), whh,
                           preferred_element_type=jnp.float32)
    i_g = jax.nn.sigmoid(gates[:, 0 * H:1 * H])
    f_g = jax.nn.sigmoid(gates[:, 1 * H:2 * H])
    g_g = jnp.tanh(gates[:, 2 * H:3 * H])
    o_g = jax.nn.sigmoid(gates[:, 3 * H:4 * H])
    c_new = f_g * c + i_g * g_g
    h_new = o_g * jnp.tanh(c_new)
    return h_new, c_new


def _lstm_last_kernel(xp_ref, whh_ref, out_ref, h_scr, c_scr):
    """Only the final hidden state reaches HBM (output_sequence=False)."""
    chunk = pl.program_id(0)

    @pl.when(chunk == 0)
    def _():
        h_scr[...] = jnp.zeros_like(h_scr)
        c_scr[...] = jnp.zeros_like(c_scr)

    H = h_scr.shape[-1]
    T = xp_ref.shape[0]
    whh = whh_ref[...]

    def body(t, carry):
        h, c = carry
        return _gate_step(xp_ref[t], h, c, whh, H)

    h, c = jax.lax.fori_loop(0, T, body, (h_scr[...], c_scr[...]), unroll=True)
    h_scr[...] = h
    c_scr[...] = c
    # Constant output block index across the ("arbitrary") grid axis -> the
    # block stays resident in VMEM and is written back to HBM once, at the end.
    out_ref[...] = h.astype(out_ref.dtype)


def _lstm_seq_kernel(xp_ref, whh_ref, out_ref, h_scr, c_scr):
    """Full-sequence output path (output_sequence=True)."""
    chunk = pl.program_id(0)

    @pl.when(chunk == 0)
    def _():
        h_scr[...] = jnp.zeros_like(h_scr)
        c_scr[...] = jnp.zeros_like(c_scr)

    H = h_scr.shape[-1]
    T = xp_ref.shape[0]
    whh = whh_ref[...]

    def body(t, carry):
        h, c = carry
        h, c = _gate_step(xp_ref[t], h, c, whh, H)
        out_ref[t] = h.astype(out_ref.dtype)
        return (h, c)

    h, c = jax.lax.fori_loop(0, T, body, (h_scr[...], c_scr[...]), unroll=True)
    h_scr[...] = h
    c_scr[...] = c


def _pick_time_chunk(S, max_chunk=64):
    """Largest chunk of timesteps per grid step (must divide S)."""
    if S <= max_chunk:
        return S
    for t in range(max_chunk, 0, -1):
        if S % t == 0:
            return t
    return 1


def net_rnn_forward(x, w_ih, w_hh, b_ih, b_hh, *,
                    output_sequence=False, matmul_dtype=jnp.float32):
    """NetRNN.forward with output_dim=None.

    x: (batch, seq, input_dim) float32.
    Returns (batch, hidden) when output_sequence=False (default), else
    (batch, seq, hidden).
    matmul_dtype: set to jnp.bfloat16 on v6e/v7x for 2x MXU throughput and
    half the weight footprint (relax validation tolerance); gate math and the
    cell state remain f32 on every generation.
    """
    B, S, D = x.shape
    H4 = w_ih.shape[0]
    H = H4 // 4

    x_sbD = jnp.transpose(x, (1, 0, 2))                  # (S, B, D)
    wih_t = jnp.transpose(w_ih)                          # (D, 4H)
    whh_t = jnp.transpose(w_hh).astype(matmul_dtype)     # (H, 4H), resident
    bias = (b_ih + b_hh).reshape(1, H4).astype(jnp.float32)

    # Parallel, non-recurrent work: all input projections + bias, done once.
    xp = _input_projection(x_sbD, wih_t, bias, matmul_dtype=matmul_dtype)  # (S,B,4H) f32

    T = _pick_time_chunk(S)
    n_chunks = S // T

    scratch = [pltpu.VMEM((B, H), jnp.float32),   # h state
               pltpu.VMEM((B, H), jnp.float32)]   # c state

    if output_sequence:
        lstm_out = pl.pallas_call(
            _lstm_seq_kernel,
            out_shape=jax.ShapeDtypeStruct((S, B, H), jnp.float32),
            grid_spec=pltpu.PrefetchScalarGridSpec(
                num_scalar_prefetch=0,
                grid=(n_chunks,),
                in_specs=[
                    pl.BlockSpec((T, B, H4), lambda c: (c, 0, 0)),  # X_proj chunk
                    pl.BlockSpec((H, H4), lambda c: (0, 0)),        # W_hh^T resident
                ],
                out_specs=pl.BlockSpec((T, B, H), lambda c: (c, 0, 0)),
                scratch_shapes=scratch,
            ),
            compiler_params=pltpu.CompilerParams(
                dimension_semantics=("arbitrary",),   # sequential recurrence
            ),
        )(xp, whh_t)
        return jnp.transpose(lstm_out, (1, 0, 2))        # (B, S, H)

    last_h = pl.pallas_call(
        _lstm_last_kernel,
        out_shape=jax.ShapeDtypeStruct((B, H), jnp.float32),
        grid_spec=pltpu.PrefetchScalarGridSpec(
            num_scalar_prefetch=0,
            grid=(n_chunks,),
            in_specs=[
                pl.BlockSpec((T, B, H4), lambda c: (c, 0, 0)),      # X_proj chunk
                pl.BlockSpec((H, H4), lambda c: (0, 0)),            # W_hh^T resident
            ],
            out_specs=pl.BlockSpec((B, H), lambda c: (0, 0)),       # resident, written once
            scratch_shapes=scratch,
        ),
        compiler_params=pltpu.CompilerParams(
            dimension_semantics=("arbitrary",),       # sequential recurrence
        ),
    )(xp, whh_t)
    return last_h


# ---------------------------------------------------------------------------
# Pure-JAX reference (nn.LSTM forward) for validation
# ---------------------------------------------------------------------------
def _lstm_reference(x, w_ih, w_hh, b_ih, b_hh, *, output_sequence=False):
    B, S, D = x.shape
    H = w_hh.shape[1]
    x_sbD = jnp.transpose(x, (1, 0, 2))
    proj = x_sbD @ w_ih.T + (b_ih + b_hh)     # (S, B, 4H), same order as kernel

    def step(carry, p_t):
        h, c = carry
        gates = p_t + h @ w_hh.T
        i = jax.nn.sigmoid(gates[:, 0 * H:1 * H])
        f = jax.nn.sigmoid(gates[:, 1 * H:2 * H])
        g = jnp.tanh(gates[:, 2 * H:3 * H])
        o = jax.nn.sigmoid(gates[:, 3 * H:4 * H])
        c = f * c + i * g
        h = o * jnp.tanh(c)
        return (h, c), h

    init = (jnp.zeros((B, H), jnp.float32), jnp.zeros((B, H), jnp.float32))
    (_, _), hs = jax.lax.scan(step, init, proj)
    if output_sequence:
        return jnp.transpose(hs, (1, 0, 2))
    return hs[-1]


if __name__ == "__main__":
    # Small shapes implied by the forward: x is (batch, seq, input_dim)
    B, S, D, H = 2, 8, 16, 32

    key = jax.random.PRNGKey(0)
    k_x, k_wih, k_whh, k_bih, k_bhh = jax.random.split(key, 5)

    bound = 1.0 / math.sqrt(H)   # PyTorch-style uniform(-1/sqrt(H), 1/sqrt(H))
    x = jax.random.normal(k_x, (B, S, D), dtype=jnp.float32)
    w_ih = jax.random.uniform(k_wih, (4 * H, D), jnp.float32, -bound, bound)
    w_hh = jax.random.uniform(k_whh, (4 * H, H), jnp.float32, -bound, bound)
    b_ih = jax.random.uniform(k_bih, (4 * H,), jnp.float32, -bound, bound)
    b_hh = jax.random.uniform(k_bhh, (4 * H,), jnp.float32, -bound, bound)

    # Default path: output_sequence=False -> last hidden state only.
    last_hidden = jax.block_until_ready(
        net_rnn_forward(x, w_ih, w_hh, b_ih, b_hh))
    ref_last = _lstm_reference(x, w_ih, w_hh, b_ih, b_hh)
    assert last_hidden.shape == (B, H)
    assert jnp.allclose(last_hidden, ref_last, atol=2e-5, rtol=2e-5), \
        float(jnp.max(jnp.abs(last_hidden - ref_last)))

    # Full-sequence path (output_sequence=True).
    seq_out = jax.block_until_ready(
        net_rnn_forward(x, w_ih, w_hh, b_ih, b_hh, output_sequence=True))
    ref_seq = _lstm_reference(x, w_ih, w_hh, b_ih, b_hh, output_sequence=True)
    assert seq_out.shape == (B, S, H)
    assert jnp.allclose(seq_out, ref_seq, atol=2e-5, rtol=2e-5), \
        float(jnp.max(jnp.abs(seq_out - ref_seq)))

    print("KERNEL_OK")
</pallas_src>

<mosaic_0001>
module attributes {stable_mosaic.version = 11 : i64} {
  func.func @_proj_kernel(%arg0: i32, %arg1: memref<16x16xf32, #tpu.memory_space<vmem>>, %arg2: memref<16x128xf32, #tpu.memory_space<vmem>>, %arg3: memref<1x128xf32, #tpu.memory_space<vmem>>, %arg4: memref<16x128xf32, #tpu.memory_space<vmem>>) attributes {dimension_semantics = [#tpu.dimension_semantics<parallel>], iteration_bounds = array<i64: 1>, scalar_prefetch = 0 : i64, scratch_operands = 0 : i64, tpu.core_type = #tpu.core_type<tc>, window_params = [{pipeline_mode = #tpu.pipeline_mode<synchronous>, transform_indices = @transform_0, window_bounds = array<i64: 16, 16>}, {pipeline_mode = #tpu.pipeline_mode<synchronous>, transform_indices = @transform_1, window_bounds = array<i64: 16, 128>}, {pipeline_mode = #tpu.pipeline_mode<synchronous>, transform_indices = @transform_2, window_bounds = array<i64: 1, 128>}, {pipeline_mode = #tpu.pipeline_mode<synchronous>, transform_indices = @transform_3, window_bounds = array<i64: 16, 128>}]} {
    %c0 = arith.constant 0 : index
    %c0_0 = arith.constant 0 : index
    %0 = vector.load %arg1[%c0, %c0_0] : memref<16x16xf32, #tpu.memory_space<vmem>>, vector<16x16xf32>
    %c0_1 = arith.constant 0 : index
    %c0_2 = arith.constant 0 : index
    %1 = vector.load %arg2[%c0_1, %c0_2] : memref<16x128xf32, #tpu.memory_space<vmem>>, vector<16x128xf32>
    %cst = arith.constant dense<0.000000e+00> : vector<16x128xf32>
    %2 = tpu.matmul %0, %1, %cst {dimension_numbers = #tpu.dot_dimension_numbers<[1], [0], [0], [1], [0, 0, 1, 1], [], []>} : vector<16x16xf32>, vector<16x128xf32>, vector<16x128xf32> -> vector<16x128xf32>
    %c0_3 = arith.constant 0 : index
    %c0_4 = arith.constant 0 : index
    %3 = vector.load %arg3[%c0_3, %c0_4] : memref<1x128xf32, #tpu.memory_space<vmem>>, vector<1x128xf32>
    %4 = vector.broadcast %3 : vector<1x128xf32> to vector<16x128xf32>
    %5 = arith.addf %2, %4 : vector<16x128xf32>
    %c0_5 = arith.constant 0 : index
    %c0_6 = arith.constant 0 : index
    %6 = vector.load %arg4[%c0_5, %c0_6] : memref<16x128xf32, #tpu.memory_space<vmem>>, vector<16x128xf32>
    tpu.vector_store %arg4[%c0_5, %c0_6], %5 {strides = array<i32>} : memref<16x128xf32, #tpu.memory_space<vmem>>, vector<16x128xf32>,
    return
  }
  func.func @transform_0(%arg0: i32) -> (i32, i32) {
    %c0_i32 = arith.constant 0 : i32
    %c0_i32_0 = arith.constant 0 : i32
    %c0_i32_1 = arith.constant 0 : i32
    return %c0_i32, %c0_i32_0 : i32, i32
  }
  func.func @transform_1(%arg0: i32) -> (i32, i32) {
    %c0_i32 = arith.constant 0 : i32
    %c0_i32_0 = arith.constant 0 : i32
    %c0_i32_1 = arith.constant 0 : i32
    return %c0_i32, %c0_i32_0 : i32, i32
  }
  func.func @transform_2(%arg0: i32) -> (i32, i32) {
    %c0_i32 = arith.constant 0 : i32
    %c0_i32_0 = arith.constant 0 : i32
    %c0_i32_1 = arith.constant 0 : i32
    return %c0_i32, %c0_i32_0 : i32, i32
  }
  func.func @transform_3(%arg0: i32) -> (i32, i32) {
    %c0_i32 = arith.constant 0 : i32
    %c0_i32_0 = arith.constant 0 : i32
    %c0_i32_1 = arith.constant 0 : i32
    return %c0_i32, %c0_i32_0 : i32, i32
  }
}

</mosaic_0001>

<llo_original>
// kernel: tpu_custom_call.1
$region0: #{tpu_custom_call.1}
  #allocation0 [shape = 'u32[]', space=smem, size = 0x4, offset = 0x4, fixed_abs, tag = 'smem constant byte address 0x4 - core index']
  #allocation1 [shape = 'u32[72,128]{1,0:T(1,128)}', space=vmem, size = 0x9000, scoped, tag = 'internal scratch']
  %s0 = inlined_call_operand.hbm [shape: f32[16,16], index: 0, kind: input, shape index: {}]
  %s1 = inlined_call_operand.hbm [shape: f32[16,128], index: 1, kind: input, shape index: {}]
  %s2 = inlined_call_operand.vmem [shape: f32[1,128], index: 2, kind: input, shape index: {}]
  %s3 = inlined_call_operand.hbm [shape: f32[16,128], index: 3, kind: output, shape index: {}]
  %s4 = sld [smem:[#allocation0]]
  $region30: #{tpu_custom_call.1} parent=0
    _
  %s6 = ssub.s32 1, %s4
  %s7 = scalar_select 0, %s6, %s4
  $region1: #{tpu_custom_call.1} parent=0
    #allocation2 [shape = 'u8[8192]{0}', space=vmem, size = 0x2000, scoped, tag = 'input window, operand 0, single buffered']
    #allocation3 [shape = 's32[1]{0}', space=sflag, size = 0x4, scoped, tag = 'scoped memory for tpu_custom_call.1']
    #allocation4 [shape = 's32[1]{0}', space=sflag, size = 0x4, scoped, tag = 'scoped memory for tpu_custom_call.1']
    #allocation5 [shape = 'u8[8192]{0}', space=vmem, size = 0x2000, scoped, tag = 'input window, operand 1, single buffered']
    #allocation6 [shape = 's32[1]{0}', space=sflag, size = 0x4, scoped, tag = 'scoped memory for tpu_custom_call.1']
    #allocation7 [shape = 'u8[8192]{0}', space=vmem, size = 0x2000, scoped, tag = 'output window, operand 0, single buffered']
    %8 = vsyncpa [#allocation3], 0
    %9 = vsyncpa [#allocation6], 0
    %10 = vsyncpa [#allocation4], 0
    // Predicated region
    $region2: #{tpu_custom_call.1} parent=1 // pred_check
      _
    $region3: #{tpu_custom_call.1} parent=1 // pred_check_branch
      %12 = sbr.rel (0) target = $region5
    $region4: #{tpu_custom_call.1} parent=1 // pred_region
      %14 = vsyncadd [#allocation3], 0
      %s15 = sshll.u32 %s0, 4
      %s16 = int_to_ptr.hbm [resolvable:$true] %s15
      %s17 = sshll.u32 [#allocation2], 4
      %s18 = int_to_ptr.vmem [resolvable:$true] %s17
      %23 = dma.hbm_to_vmem [thread:$0]  %s16, 256, %s18, [#allocation3], 128, 128, 8
    $region5: #{tpu_custom_call.1} parent=1 // pred_fallthru
      _
    // Predicated region
    $region6: #{tpu_custom_call.1} parent=1 // pred_check
      _
    $region7: #{tpu_custom_call.1} parent=1 // pred_check_branch
      %25 = sbr.rel (0) target = $region9
    $region8: #{tpu_custom_call.1} parent=1 // pred_region
      %27 = vsyncadd [#allocation6], 0
      %s28 = sshll.u32 %s1, 4
      %s29 = int_to_ptr.hbm [resolvable:$true] %s28
      %s30 = sshll.u32 [#allocation5], 4
      %s31 = int_to_ptr.vmem [resolvable:$true] %s30
      %36 = dma.hbm_to_vmem [thread:$0]  %s29, 256, %s31, [#allocation6], 128, 128, 8
    $region9: #{tpu_custom_call.1} parent=1 // pred_fallthru
      _
    // Predicated region
    $region10: #{tpu_custom_call.1} parent=1 // pred_check
      _
    $region11: #{tpu_custom_call.1} parent=1 // pred_check_branch
      %38 = sbr.rel (0) target = $region13
    $region12: #{tpu_custom_call.1} parent=1 // pred_region
      _
    $region13: #{tpu_custom_call.1} parent=1 // pred_fallthru
      _
    // Predicated region
    $region14: #{tpu_custom_call.1} parent=1 // pred_check
      _
    $region15: #{tpu_custom_call.1} parent=1 // pred_check_branch
      %40 = sbr.rel (0) target = $region17
    $region16: #{tpu_custom_call.1} parent=1 // pred_region
      %42 = dma.done [#allocation3], 256
    $region17: #{tpu_custom_call.1} parent=1 // pred_fallthru
      _
    // Predicated region
    $region18: #{tpu_custom_call.1} parent=1 // pred_check
      _
    $region19: #{tpu_custom_call.1} parent=1 // pred_check_branch
      %44 = sbr.rel (0) target = $region21
    $region20: #{tpu_custom_call.1} parent=1 // pred_region
      %46 = dma.done [#allocation6], 256
    $region21: #{tpu_custom_call.1} parent=1 // pred_fallthru
      _
    %v47 = vld [vmem:[#allocation2] sm:$0xff]
    %v48 = vld [vmem:[#allocation2 + $0x8] sm:$0xff]
    %v49 = vld [vmem:[#allocation5] sm:$0xff]
    %v50 = vld [vmem:[#allocation5 + $0x8] sm:$0xff]
    %v51 = vld [vmem:[%s2] sm:$0x1]
    %v53 = vperm.slane %v51, 0
    %vm55 = vcmask 130048
    %v57 = vsel %vm55, %v47, 0
    %v60 = vsel %vm55, %v48, 0
    %62 = vmatpush.msra.mxu0 0.0
    %63 = vmatpush.msra.mxu0 0.0
    %64 = vmatpush.msra.mxu0 0.0
    %65 = vmatpush.msra.mxu0 0.0
    %66 = vmatpush.msra.mxu0 0.0
    %67 = vmatpush.msra.mxu0 0.0
    %68 = vmatpush.msra.mxu0 0.0
    %69 = vmatpush.msra.mxu0 0.0
    %70 = vmatpush.msra.mxu0 0.0
    %71 = vmatpush.msra.mxu0 0.0
    %72 = vmatpush.msra.mxu0 0.0
    %73 = vmatpush.msra.mxu0 0.0
    %74 = vmatpush.msra.mxu0 0.0
    %75 = vmatpush.msra.mxu0 0.0
    %76 = vmatpush.msra.mxu0 %v50
    %77 = vmatpush.msra.mxu0 %v49
    %78 = vmatmul.f32.gmra.mxu0 %v57
    %v79 = vpop.f32.mrf.mxu0
    %v80 = vadd.f32 %v53, %v79
    %81 = vmatmul.f32.gmra.mxu0 %v60
    %v82 = vpop.f32.mrf.mxu0
    %v83 = vadd.f32 %v53, %v82
    %84 = vdwg.mxu0
    %85 = vst [vmem:[#allocation7] sm:$0xff] %v80
    %86 = vst [vmem:[#allocation7 + $0x8] sm:$0xff] %v83
    // Predicated region
    $region22: #{tpu_custom_call.1} parent=1 // pred_check
      _
    $region23: #{tpu_custom_call.1} parent=1 // pred_check_branch
      %88 = sbr.rel (0) target = $region25
    $region24: #{tpu_custom_call.1} parent=1 // pred_region
      %90 = vsyncadd [#allocation4], 0
      %s91 = sshll.u32 [#allocation7], 4
      %s92 = int_to_ptr.vmem [resolvable:$true] %s91
      %s93 = sshll.u32 %s3, 4
      %s94 = int_to_ptr.hbm [resolvable:$true] %s93
      %99 = dma.vmem_to_hbm [thread:$0]  %s92, 256, %s94, [#allocation4], 128, 128, 8
    $region25: #{tpu_custom_call.1} parent=1 // pred_fallthru
      _
    // Predicated region
    $region26: #{tpu_custom_call.1} parent=1 // pred_check
      _
    $region27: #{tpu_custom_call.1} parent=1 // pred_check_branch
      %101 = sbr.rel (0) target = $region29
    $region28: #{tpu_custom_call.1} parent=1 // pred_region
      %103 = dma.done [#allocation4], 256
    $region29: #{tpu_custom_call.1} parent=1 // pred_fallthru
      _
    %104 = vsyncpa [#allocation3], 1
    %105 = vsyncpa [#allocation6], 1
    %106 = vsyncpa [#allocation4], 1

</llo_original>
